<compile_context>
chip_gen: v5e
topology: v5e:2x2
jax: 0.10.0
libtpu: 0.0.40
codegen_flags: <defaults>
</compile_context>

<pallas_src>
import functools

import numpy as np
import jax
import jax.numpy as jnp
from jax import lax
from jax.experimental import pallas as pl
from jax.experimental.pallas import tpu as pltpu


_INV_SQRT2 = float(1.0 / np.sqrt(2.0))

# Matmul operand dtype for the 1x1-conv MXU matmuls.  float32 keeps the kernel
# within ~1e-6 of the reference; on v6e/v7x set to jnp.bfloat16 for higher MXU
# throughput (accumulation stays f32 via preferred_element_type) and
# re-validate against the tolerance.
_MM_DTYPE = jnp.float32


def _erf_approx(x):
    """Abramowitz & Stegun 7.1.26 erf approximation, |error| <= 1.5e-7."""
    a1, a2, a3, a4, a5 = (0.254829592, -0.284496736, 1.421413741,
                          -1.453152027, 1.061405429)
    p = 0.3275911
    ax = jnp.abs(x)
    t = 1.0 / (1.0 + p * ax)
    poly = ((((a5 * t + a4) * t + a3) * t + a2) * t + a1) * t
    y = 1.0 - poly * jnp.exp(-ax * ax)
    return jnp.where(x >= 0, y, -y)


def _gelu_exact(x):
    # matches torch.nn.functional.gelu(x) (default, erf-based) to ~1e-7
    return 0.5 * x * (1.0 + _erf_approx(x * _INV_SQRT2))


def _gdfn_kernel(x_mid_ref, x_up_ref, x_dn_ref, w_in_ref, w_dw_ref, w_out_ref,
                 o_ref, slab_ref, lft_ref, rgt_ref, *, hidden, W, th, ck):
    # Block shapes:
    #   x_mid_ref : (1, C, th*W)      this row tile (spatial flattened to lanes)
    #   x_up_ref  : (1, 1, C, W)      image row above the tile (zeros at top)
    #   x_dn_ref  : (1, 1, C, W)      image row below the tile (zeros at bottom)
    #   w_in_ref  : (2*hidden, C)     project_in  (1x1 conv)
    #   w_dw_ref  : (2*hidden, 9)     depthwise 3x3 taps, row-major (di, dj)
    #   w_out_ref : (C, hidden)       project_out (1x1 conv)
    #   o_ref     : (1, C, th*W)
    #   slab_ref  : (2*hidden, th*W + 2W)   [halo row | tile rows | halo row]
    #   lft_ref/rgt_ref : same shape, slab shifted by -/+1 image column
    #                     (masked to zero at the image left/right borders)
    f32 = jnp.float32
    c2 = 2 * hidden
    n = th * W
    L = n + 2 * W

    # ---- project_in (1x1 conv) on [halo above | tile | halo below]; all three
    # stores land at lane-aligned slab offsets (0, W, W + n).
    w_in = w_in_ref[...].astype(_MM_DTYPE)
    slab_ref[:, 0:W] = jnp.dot(w_in, x_up_ref[0, 0].astype(_MM_DTYPE),
                               preferred_element_type=f32)
    slab_ref[:, W:W + n] = jnp.dot(w_in, x_mid_ref[0].astype(_MM_DTYPE),
                                   preferred_element_type=f32)
    slab_ref[:, W + n:L] = jnp.dot(w_in, x_dn_ref[0, 0].astype(_MM_DTYPE),
                                   preferred_element_type=f32)

    # ---- pre-shifted slabs for the dj = 0 / 2 taps.
    # Slab lane q maps to image column q % W; masking BEFORE the shift makes
    # the shifted slabs carry exact zero padding at the image left/right
    # borders, so the 9 taps below are plain row-offset (di*W) slices.
    slab = slab_ref[...]
    colq = lax.broadcasted_iota(jnp.int32, (1, L), 1) % W
    zc = jnp.zeros((c2, 1), f32)
    # rgt[q] = slab value one image column to the RIGHT of q (0 past the border)
    rgt_ref[...] = jnp.concatenate(
        [jnp.where(colq[:, 1:] == 0, 0.0, slab[:, 1:]), zc], axis=1)
    # lft[q] = slab value one image column to the LEFT of q (0 past the border)
    lft_ref[...] = jnp.concatenate(
        [zc, jnp.where(colq[:, :-1] == W - 1, 0.0, slab[:, :-1])], axis=1)

    # ---- depthwise 3x3 (padding=1) + GELU gating + project_out, chunked over
    # lanes so acc / g stay small; acc is seeded by the first tap product.
    w_dw = w_dw_ref[...].astype(f32)          # hoisted cast
    w_out = w_out_ref[...].astype(_MM_DTYPE)
    srcs = (lft_ref, slab_ref, rgt_ref)       # dj = 0, 1, 2
    for c in range(n // ck):
        s0 = c * ck
        acc = None
        for di in range(3):
            for dj in range(3):
                win = srcs[dj][:, s0 + di * W:s0 + di * W + ck]
                tap = w_dw[:, 3 * di + dj:3 * di + dj + 1]      # (c2, 1)
                t = tap * win
                acc = t if acc is None else acc + t
        x1 = acc[:hidden, :]
        x2 = acc[hidden:, :]
        g = (_gelu_exact(x1) * x2).astype(_MM_DTYPE)            # (hidden, ck)
        o_ref[0, :, s0:s0 + ck] = jnp.dot(
            w_out, g, preferred_element_type=f32).astype(o_ref.dtype)


def _pick_row_tile(H, W, cap_lanes=4096):
    """Row-tile height th: H % th == 0 and th*W a multiple of 128 lanes,
    capped at `cap_lanes` flattened lanes (review: 4096 is safe on v5e/v6e/v7x
    and amortizes per-step overhead); prefers >= 2 row tiles so the (B, n_r)
    grid keeps both v7x TensorCores busy; falls back to the full image."""
    valid = [t for t in range(1, H + 1) if H % t == 0 and (t * W) % 128 == 0]
    if not valid:
        return H          # no lane-dense tiling possible; full-image block
    multi = [t for t in valid if t < H]
    if multi:
        capped = [t for t in multi if t * W <= cap_lanes]
        return max(capped) if capped else min(multi)
    return valid[0]


def _pick_chunk(n):
    """Lane-chunk size for the depthwise/gating loop (multiple of 128)."""
    for ck in (512, 384, 256, 128):
        if n % ck == 0:
            return ck
    return n


def gdfn_forward(x, params):
    """x: (B, C, H, W); params: w_in (2h, C), w_dw (2h, 3, 3), w_out (C, h)."""
    B, C, H, W = x.shape
    w_in, w_dw, w_out = params["w_in"], params["w_dw"], params["w_out"]
    c2 = w_in.shape[0]
    hidden = c2 // 2
    th = _pick_row_tile(H, W)
    n_r = H // th
    n = th * W
    L = n + 2 * W
    HW = H * W
    ck = _pick_chunk(n)

    x_flat = x.reshape(B, C, HW)          # lane-dense flattened-spatial layout
    w_dw_flat = w_dw.reshape(c2, 9)

    # Single-row halos: rows r*th-1 / r*th+th per tile, with zeros baked in at
    # the image top/bottom (== the conv's zero padding).  This is 2/th of x,
    # so the kernel's input traffic drops from 3x to ~(1 + 2/th)x.
    zrow = jnp.zeros((B, C, 1, W), x.dtype)
    above = jnp.concatenate([zrow, x[:, :, th - 1:H - 1:th, :]], axis=2)
    below = jnp.concatenate([x[:, :, th:H:th, :], zrow], axis=2)
    above = jnp.transpose(above, (0, 2, 1, 3))   # (B, n_r, C, W)
    below = jnp.transpose(below, (0, 2, 1, 3))   # (B, n_r, C, W)

    # Explicit VMEM budget: 3 slabs + double-buffered mid/out tiles + halos
    # + weights, with headroom; clamped to [32 MiB, 48 MiB] so it is legal on
    # every generation (v7x physical VMEM is 64 MiB).
    est_bytes = 4 * (3 * c2 * L + 4 * C * n + 4 * C * W
                     + c2 * C + c2 * 9 + C * hidden)
    vmem_limit = int(min(max(2 * est_bytes, 32 * 1024 * 1024),
                         48 * 1024 * 1024))

    kern = functools.partial(_gdfn_kernel, hidden=hidden, W=W, th=th, ck=ck)

    out_flat = pl.pallas_call(
        kern,
        out_shape=jax.ShapeDtypeStruct((B, C, HW), x.dtype),
        grid=(B, n_r),
        in_specs=[
            pl.BlockSpec((1, C, n), lambda b, r: (b, 0, r)),        # mid tile
            pl.BlockSpec((1, 1, C, W), lambda b, r: (b, r, 0, 0)),  # row above
            pl.BlockSpec((1, 1, C, W), lambda b, r: (b, r, 0, 0)),  # row below
            pl.BlockSpec((c2, C), lambda b, r: (0, 0)),             # project_in
            pl.BlockSpec((c2, 9), lambda b, r: (0, 0)),             # dwconv taps
            pl.BlockSpec((C, hidden), lambda b, r: (0, 0)),         # project_out
        ],
        out_specs=pl.BlockSpec((1, C, n), lambda b, r: (b, 0, r)),
        scratch_shapes=[pltpu.VMEM((c2, L), jnp.float32),   # project_in slab
                        pltpu.VMEM((c2, L), jnp.float32),   # left-shifted slab
                        pltpu.VMEM((c2, L), jnp.float32)],  # right-shifted slab
        compiler_params=pltpu.CompilerParams(
            dimension_semantics=("parallel", "parallel"),
            vmem_limit_bytes=vmem_limit),
    )(x_flat, above, below, w_in, w_dw_flat, w_out)
    return out_flat.reshape(B, C, H, W)


# ---------------------------------------------------------------------------
# pure-JAX reference (mirrors the PyTorch GDFN forward) for verification
# ---------------------------------------------------------------------------
def gdfn_ref(x, params):
    c2 = params["w_in"].shape[0]
    hidden = c2 // 2
    y = jnp.einsum("oc,bchw->bohw", params["w_in"], x)
    y = lax.conv_general_dilated(
        y, params["w_dw"][:, None, :, :], window_strides=(1, 1), padding="SAME",
        feature_group_count=c2, dimension_numbers=("NCHW", "OIHW", "NCHW"))
    x1, x2 = y[:, :hidden], y[:, hidden:]
    g = jax.nn.gelu(x1, approximate=False) * x2
    return jnp.einsum("oc,bchw->bohw", params["w_out"], g)


if __name__ == "__main__":
    # GDFN(channels=4, expansion_factor=2) on a (2, 4, 16, 16) input.
    B, C, H, W = 2, 4, 16, 16
    expansion_factor = 2
    hidden = int(C * expansion_factor)     # 8
    c2 = 2 * hidden                        # 16

    key = jax.random.PRNGKey(0)
    kx, k1, k2, k3 = jax.random.split(key, 4)
    x = jax.random.normal(kx, (B, C, H, W), jnp.float32)

    # Deterministic synthetic parameters (shapes match the nn.Module __init__).
    params = {
        "w_in": 0.2 * jax.random.normal(k1, (c2, C), jnp.float32),       # project_in 1x1
        "w_dw": 0.2 * jax.random.normal(k2, (c2, 3, 3), jnp.float32),    # depthwise 3x3
        "w_out": 0.2 * jax.random.normal(k3, (C, hidden), jnp.float32),  # project_out 1x1
    }

    fwd = jax.jit(gdfn_forward)
    out = jax.block_until_ready(fwd(x, params))

    ref = gdfn_ref(x, params)
    assert out.shape == (B, C, H, W)
    err = float(np.max(np.abs(np.asarray(out) - np.asarray(ref))))
    if not np.allclose(np.asarray(out), np.asarray(ref), rtol=2e-3, atol=2e-3):
        raise AssertionError(f"Pallas GDFN mismatch vs reference, max abs err = {err}")
    print("KERNEL_OK")
</pallas_src>

<mosaic_0001>
module attributes {stable_mosaic.version = 11 : i64} {
  func.func @_gdfn_kernel(%arg0: i32, %arg1: i32, %arg2: memref<1x4x128xf32, #tpu.memory_space<vmem>>, %arg3: memref<1x1x4x16xf32, #tpu.memory_space<vmem>>, %arg4: memref<1x1x4x16xf32, #tpu.memory_space<vmem>>, %arg5: memref<16x4xf32, #tpu.memory_space<vmem>>, %arg6: memref<16x9xf32, #tpu.memory_space<vmem>>, %arg7: memref<4x8xf32, #tpu.memory_space<vmem>>, %arg8: memref<1x4x128xf32, #tpu.memory_space<vmem>>, %arg9: memref<16x160xf32, #tpu.memory_space<vmem>>, %arg10: memref<16x160xf32, #tpu.memory_space<vmem>>, %arg11: memref<16x160xf32, #tpu.memory_space<vmem>>) attributes {dimension_semantics = [#tpu.dimension_semantics<parallel>, #tpu.dimension_semantics<parallel>], iteration_bounds = array<i64: 2, 2>, scalar_prefetch = 0 : i64, scratch_operands = 3 : i64, tpu.core_type = #tpu.core_type<tc>, window_params = [{transform_indices = @transform_0, window_bounds = array<i64: 1, 4, 128>}, {transform_indices = @transform_1, window_bounds = array<i64: 1, 1, 4, 16>}, {transform_indices = @transform_2, window_bounds = array<i64: 1, 1, 4, 16>}, {pipeline_mode = #tpu.pipeline_mode<synchronous>, transform_indices = @transform_3, window_bounds = array<i64: 16, 4>}, {pipeline_mode = #tpu.pipeline_mode<synchronous>, transform_indices = @transform_4, window_bounds = array<i64: 16, 9>}, {pipeline_mode = #tpu.pipeline_mode<synchronous>, transform_indices = @transform_5, window_bounds = array<i64: 4, 8>}, {transform_indices = @transform_6, window_bounds = array<i64: 1, 4, 128>}]} {
    %c0 = arith.constant 0 : index
    %c0_0 = arith.constant 0 : index
    %0 = vector.load %arg5[%c0, %c0_0] : memref<16x4xf32, #tpu.memory_space<vmem>>, vector<16x4xf32>
    %c0_1 = arith.constant 0 : index
    %c0_2 = arith.constant 0 : index
    %c0_3 = arith.constant 0 : index
    %c0_4 = arith.constant 0 : index
    %1 = vector.load %arg3[%c0_1, %c0_2, %c0_3, %c0_4] : memref<1x1x4x16xf32, #tpu.memory_space<vmem>>, vector<1x1x4x16xf32>
    %2 = vector.shape_cast %1 : vector<1x1x4x16xf32> to vector<4x16xf32>
    %cst = arith.constant dense<0.000000e+00> : vector<16x16xf32>
    %3 = tpu.matmul %0, %2, %cst {dimension_numbers = #tpu.dot_dimension_numbers<[1], [0], [0], [1], [0, 0, 1, 1], [], []>} : vector<16x4xf32>, vector<4x16xf32>, vector<16x16xf32> -> vector<16x16xf32>
    %c0_5 = arith.constant 0 : index
    %c0_6 = arith.constant 0 : index
    %4 = vector.load %arg9[%c0_5, %c0_6] : memref<16x160xf32, #tpu.memory_space<vmem>>, vector<16x16xf32>
    tpu.vector_store %arg9[%c0_5, %c0_6], %3 {strides = array<i32>} : memref<16x160xf32, #tpu.memory_space<vmem>>, vector<16x16xf32>,
    %c0_7 = arith.constant 0 : index
    %c0_8 = arith.constant 0 : index
    %c0_9 = arith.constant 0 : index
    %5 = vector.load %arg2[%c0_7, %c0_8, %c0_9] : memref<1x4x128xf32, #tpu.memory_space<vmem>>, vector<1x4x128xf32>
    %6 = vector.shape_cast %5 : vector<1x4x128xf32> to vector<4x128xf32>
    %cst_10 = arith.constant dense<0.000000e+00> : vector<16x128xf32>
    %7 = tpu.matmul %0, %6, %cst_10 {dimension_numbers = #tpu.dot_dimension_numbers<[1], [0], [0], [1], [0, 0, 1, 1], [], []>} : vector<16x4xf32>, vector<4x128xf32>, vector<16x128xf32> -> vector<16x128xf32>
    %c0_11 = arith.constant 0 : index
    %c16 = arith.constant 16 : index
    %8 = vector.load %arg9[%c0_11, %c16] : memref<16x160xf32, #tpu.memory_space<vmem>>, vector<16x128xf32>
    tpu.vector_store %arg9[%c0_11, %c16], %7 {strides = array<i32>} : memref<16x160xf32, #tpu.memory_space<vmem>>, vector<16x128xf32>,
    %c0_12 = arith.constant 0 : index
    %c0_13 = arith.constant 0 : index
    %c0_14 = arith.constant 0 : index
    %c0_15 = arith.constant 0 : index
    %9 = vector.load %arg4[%c0_12, %c0_13, %c0_14, %c0_15] : memref<1x1x4x16xf32, #tpu.memory_space<vmem>>, vector<1x1x4x16xf32>
    %10 = vector.shape_cast %9 : vector<1x1x4x16xf32> to vector<4x16xf32>
    %cst_16 = arith.constant dense<0.000000e+00> : vector<16x16xf32>
    %11 = tpu.matmul %0, %10, %cst_16 {dimension_numbers = #tpu.dot_dimension_numbers<[1], [0], [0], [1], [0, 0, 1, 1], [], []>} : vector<16x4xf32>, vector<4x16xf32>, vector<16x16xf32> -> vector<16x16xf32>
    %c0_17 = arith.constant 0 : index
    %c144 = arith.constant 144 : index
    %12 = vector.load %arg9[%c0_17, %c144] : memref<16x160xf32, #tpu.memory_space<vmem>>, vector<16x16xf32>
    tpu.vector_store %arg9[%c0_17, %c144], %11 {strides = array<i32>} : memref<16x160xf32, #tpu.memory_space<vmem>>, vector<16x16xf32>,
    %c0_18 = arith.constant 0 : index
    %c0_19 = arith.constant 0 : index
    %13 = vector.load %arg9[%c0_18, %c0_19] : memref<16x160xf32, #tpu.memory_space<vmem>>, vector<16x160xf32>
    %14 = tpu.iota {dimensions = array<i32: 1>} : vector<1x160xi32>
    %c16_i32 = arith.constant 16 : i32
    %c0_i32 = arith.constant 0 : i32
    %15 = arith.cmpi eq, %c16_i32, %c0_i32 : i32
    %c1_i32 = arith.constant 1 : i32
    %16 = arith.select %15, %c1_i32, %c16_i32 : i32
    %17 = vector.broadcast %16 : i32 to vector<1x160xi32>
    %18 = arith.remsi %14, %17 : vector<1x160xi32>
    %c0_i32_20 = arith.constant 0 : i32
    %19 = vector.broadcast %c0_i32_20 : i32 to vector<1x160xi32>
    %20 = arith.cmpi ne, %18, %19 : vector<1x160xi32>
    %c0_i32_21 = arith.constant 0 : i32
    %21 = vector.broadcast %c0_i32_21 : i32 to vector<1x160xi32>
    %22 = arith.cmpi slt, %18, %21 : vector<1x160xi32>
    %c0_i32_22 = arith.constant 0 : i32
    %23 = arith.cmpi slt, %16, %c0_i32_22 : i32
    %24 = vector.broadcast %23 : i1 to vector<1x160xi1>
    %25 = vector.broadcast %24 : vector<1x160xi1> to vector<1x160xi1>
    %26 = arith.xori %22, %25 : vector<1x160xi1>
    %27 = arith.andi %26, %20 : vector<1x160xi1>
    %28 = vector.broadcast %16 : i32 to vector<1x160xi32>
    %29 = arith.addi %18, %28 : vector<1x160xi32>
    %30 = arith.select %27, %29, %18 : vector<1x160xi1>, vector<1x160xi32>
    %cst_23 = arith.constant 0.000000e+00 : f32
    %31 = vector.broadcast %cst_23 : f32 to vector<16x1xf32>
    %32 = vector.extract_strided_slice %30 {offsets = [0, 1], sizes = [1, 159], strides = [1, 1]} : vector<1x160xi32> to vector<1x159xi32>
    %c0_i32_24 = arith.constant 0 : i32
    %33 = vector.broadcast %c0_i32_24 : i32 to vector<1x159xi32>
    %34 = arith.cmpi eq, %32, %33 : vector<1x159xi32>
    %35 = vector.extract_strided_slice %13 {offsets = [0, 1], sizes = [16, 159], strides = [1, 1]} : vector<16x160xf32> to vector<16x159xf32>
    %cst_25 = arith.constant 0.000000e+00 : f32
    %36 = vector.shape_cast %34 : vector<1x159xi1> to vector<1x159xi1>
    %37 = vector.broadcast %36 : vector<1x159xi1> to vector<16x159xi1>
    %38 = vector.broadcast %cst_25 : f32 to vector<16x159xf32>
    %39 = arith.select %37, %38, %35 : vector<16x159xi1>, vector<16x159xf32>
    %40 = tpu.concatenate %39, %31 in 1 : vector<16x159xf32>, vector<16x1xf32> -> vector<16x160xf32>
    %c0_26 = arith.constant 0 : index
    %c0_27 = arith.constant 0 : index
    %41 = vector.load %arg11[%c0_26, %c0_27] : memref<16x160xf32, #tpu.memory_space<vmem>>, vector<16x160xf32>
    tpu.vector_store %arg11[%c0_26, %c0_27], %40 {strides = array<i32>} : memref<16x160xf32, #tpu.memory_space<vmem>>, vector<16x160xf32>,
    %42 = vector.extract_strided_slice %30 {offsets = [0, 0], sizes = [1, 159], strides = [1, 1]} : vector<1x160xi32> to vector<1x159xi32>
    %c15_i32 = arith.constant 15 : i32
    %43 = vector.broadcast %c15_i32 : i32 to vector<1x159xi32>
    %44 = arith.cmpi eq, %42, %43 : vector<1x159xi32>
    %45 = vector.extract_strided_slice %13 {offsets = [0, 0], sizes = [16, 159], strides = [1, 1]} : vector<16x160xf32> to vector<16x159xf32>
    %cst_28 = arith.constant 0.000000e+00 : f32
    %46 = vector.shape_cast %44 : vector<1x159xi1> to vector<1x159xi1>
    %47 = vector.broadcast %46 : vector<1x159xi1> to vector<16x159xi1>
    %48 = vector.broadcast %cst_28 : f32 to vector<16x159xf32>
    %49 = arith.select %47, %48, %45 : vector<16x159xi1>, vector<16x159xf32>
    %50 = tpu.concatenate %31, %49 in 1 : vector<16x1xf32>, vector<16x159xf32> -> vector<16x160xf32>
    %c0_29 = arith.constant 0 : index
    %c0_30 = arith.constant 0 : index
    %51 = vector.load %arg10[%c0_29, %c0_30] : memref<16x160xf32, #tpu.memory_space<vmem>>, vector<16x160xf32>
    tpu.vector_store %arg10[%c0_29, %c0_30], %50 {strides = array<i32>} : memref<16x160xf32, #tpu.memory_space<vmem>>, vector<16x160xf32>,
    %c0_31 = arith.constant 0 : index
    %c0_32 = arith.constant 0 : index
    %52 = vector.load %arg6[%c0_31, %c0_32] : memref<16x9xf32, #tpu.memory_space<vmem>>, vector<16x9xf32>
    %c0_33 = arith.constant 0 : index
    %c0_34 = arith.constant 0 : index
    %53 = vector.load %arg7[%c0_33, %c0_34] : memref<4x8xf32, #tpu.memory_space<vmem>>, vector<4x8xf32>
    %c0_35 = arith.constant 0 : index
    %c0_36 = arith.constant 0 : index
    %54 = vector.load %arg10[%c0_35, %c0_36] : memref<16x160xf32, #tpu.memory_space<vmem>>, vector<16x128xf32>
    %55 = vector.extract_strided_slice %52 {offsets = [0, 0], sizes = [16, 1], strides = [1, 1]} : vector<16x9xf32> to vector<16x1xf32>
    %56 = vector.broadcast %55 : vector<16x1xf32> to vector<16x128xf32>
    %57 = arith.mulf %56, %54 : vector<16x128xf32>
    %c0_37 = arith.constant 0 : index
    %c0_38 = arith.constant 0 : index
    %58 = vector.load %arg9[%c0_37, %c0_38] : memref<16x160xf32, #tpu.memory_space<vmem>>, vector<16x128xf32>
    %59 = vector.extract_strided_slice %52 {offsets = [0, 1], sizes = [16, 1], strides = [1, 1]} : vector<16x9xf32> to vector<16x1xf32>
    %60 = vector.broadcast %59 : vector<16x1xf32> to vector<16x128xf32>
    %61 = arith.mulf %60, %58 : vector<16x128xf32>
    %62 = arith.addf %57, %61 : vector<16x128xf32>
    %c0_39 = arith.constant 0 : index
    %c0_40 = arith.constant 0 : index
    %63 = vector.load %arg11[%c0_39, %c0_40] : memref<16x160xf32, #tpu.memory_space<vmem>>, vector<16x128xf32>
    %64 = vector.extract_strided_slice %52 {offsets = [0, 2], sizes = [16, 1], strides = [1, 1]} : vector<16x9xf32> to vector<16x1xf32>
    %65 = vector.broadcast %64 : vector<16x1xf32> to vector<16x128xf32>
    %66 = arith.mulf %65, %63 : vector<16x128xf32>
    %67 = arith.addf %62, %66 : vector<16x128xf32>
    %c0_41 = arith.constant 0 : index
    %c16_42 = arith.constant 16 : index
    %68 = vector.load %arg10[%c0_41, %c16_42] : memref<16x160xf32, #tpu.memory_space<vmem>>, vector<16x128xf32>
    %69 = vector.extract_strided_slice %52 {offsets = [0, 3], sizes = [16, 1], strides = [1, 1]} : vector<16x9xf32> to vector<16x1xf32>
    %70 = vector.broadcast %69 : vector<16x1xf32> to vector<16x128xf32>
    %71 = arith.mulf %70, %68 : vector<16x128xf32>
    %72 = arith.addf %67, %71 : vector<16x128xf32>
    %c0_43 = arith.constant 0 : index
    %c16_44 = arith.constant 16 : index
    %73 = vector.load %arg9[%c0_43, %c16_44] : memref<16x160xf32, #tpu.memory_space<vmem>>, vector<16x128xf32>
    %74 = vector.extract_strided_slice %52 {offsets = [0, 4], sizes = [16, 1], strides = [1, 1]} : vector<16x9xf32> to vector<16x1xf32>
    %75 = vector.broadcast %74 : vector<16x1xf32> to vector<16x128xf32>
    %76 = arith.mulf %75, %73 : vector<16x128xf32>
    %77 = arith.addf %72, %76 : vector<16x128xf32>
    %c0_45 = arith.constant 0 : index
    %c16_46 = arith.constant 16 : index
    %78 = vector.load %arg11[%c0_45, %c16_46] : memref<16x160xf32, #tpu.memory_space<vmem>>, vector<16x128xf32>
    %79 = vector.extract_strided_slice %52 {offsets = [0, 5], sizes = [16, 1], strides = [1, 1]} : vector<16x9xf32> to vector<16x1xf32>
    %80 = vector.broadcast %79 : vector<16x1xf32> to vector<16x128xf32>
    %81 = arith.mulf %80, %78 : vector<16x128xf32>
    %82 = arith.addf %77, %81 : vector<16x128xf32>
    %c0_47 = arith.constant 0 : index
    %c32 = arith.constant 32 : index
    %83 = vector.load %arg10[%c0_47, %c32] : memref<16x160xf32, #tpu.memory_space<vmem>>, vector<16x128xf32>
    %84 = vector.extract_strided_slice %52 {offsets = [0, 6], sizes = [16, 1], strides = [1, 1]} : vector<16x9xf32> to vector<16x1xf32>
    %85 = vector.broadcast %84 : vector<16x1xf32> to vector<16x128xf32>
    %86 = arith.mulf %85, %83 : vector<16x128xf32>
    %87 = arith.addf %82, %86 : vector<16x128xf32>
    %c0_48 = arith.constant 0 : index
    %c32_49 = arith.constant 32 : index
    %88 = vector.load %arg9[%c0_48, %c32_49] : memref<16x160xf32, #tpu.memory_space<vmem>>, vector<16x128xf32>
    %89 = vector.extract_strided_slice %52 {offsets = [0, 7], sizes = [16, 1], strides = [1, 1]} : vector<16x9xf32> to vector<16x1xf32>
    %90 = vector.broadcast %89 : vector<16x1xf32> to vector<16x128xf32>
    %91 = arith.mulf %90, %88 : vector<16x128xf32>
    %92 = arith.addf %87, %91 : vector<16x128xf32>
    %c0_50 = arith.constant 0 : index
    %c32_51 = arith.constant 32 : index
    %93 = vector.load %arg11[%c0_50, %c32_51] : memref<16x160xf32, #tpu.memory_space<vmem>>, vector<16x128xf32>
    %94 = vector.extract_strided_slice %52 {offsets = [0, 8], sizes = [16, 1], strides = [1, 1]} : vector<16x9xf32> to vector<16x1xf32>
    %95 = vector.broadcast %94 : vector<16x1xf32> to vector<16x128xf32>
    %96 = arith.mulf %95, %93 : vector<16x128xf32>
    %97 = arith.addf %92, %96 : vector<16x128xf32>
    %98 = vector.extract_strided_slice %97 {offsets = [0, 0], sizes = [8, 128], strides = [1, 1]} : vector<16x128xf32> to vector<8x128xf32>
    %99 = vector.extract_strided_slice %97 {offsets = [8, 0], sizes = [8, 128], strides = [1, 1]} : vector<16x128xf32> to vector<8x128xf32>
    %cst_52 = arith.constant 5.000000e-01 : f32
    %100 = vector.broadcast %cst_52 : f32 to vector<8x128xf32>
    %101 = arith.mulf %100, %98 : vector<8x128xf32>
    %cst_53 = arith.constant 0.707106769 : f32
    %102 = vector.broadcast %cst_53 : f32 to vector<8x128xf32>
    %103 = arith.mulf %98, %102 : vector<8x128xf32>
    %104 = math.absf %103 : vector<8x128xf32>
    %cst_54 = arith.constant 0.327591091 : f32
    %105 = vector.broadcast %cst_54 : f32 to vector<8x128xf32>
    %106 = arith.mulf %105, %104 : vector<8x128xf32>
    %cst_55 = arith.constant 1.000000e+00 : f32
    %107 = vector.broadcast %cst_55 : f32 to vector<8x128xf32>
    %108 = arith.addf %107, %106 : vector<8x128xf32>
    %cst_56 = arith.constant 1.000000e+00 : f32
    %109 = vector.broadcast %cst_56 : f32 to vector<8x128xf32>
    %110 = arith.divf %109, %108 : vector<8x128xf32>
    %cst_57 = arith.constant 1.06140542 : f32
    %111 = vector.broadcast %cst_57 : f32 to vector<8x128xf32>
    %112 = arith.mulf %111, %110 : vector<8x128xf32>
    %cst_58 = arith.constant -1.45315206 : f32
    %113 = vector.broadcast %cst_58 : f32 to vector<8x128xf32>
    %114 = arith.addf %112, %113 : vector<8x128xf32>
    %115 = arith.mulf %114, %110 : vector<8x128xf32>
    %cst_59 = arith.constant 1.42141378 : f32
    %116 = vector.broadcast %cst_59 : f32 to vector<8x128xf32>
    %117 = arith.addf %115, %116 : vector<8x128xf32>
    %118 = arith.mulf %117, %110 : vector<8x128xf32>
    %cst_60 = arith.constant -0.284496725 : f32
    %119 = vector.broadcast %cst_60 : f32 to vector<8x128xf32>
    %120 = arith.addf %118, %119 : vector<8x128xf32>
    %121 = arith.mulf %120, %110 : vector<8x128xf32>
    %cst_61 = arith.constant 0.254829586 : f32
    %122 = vector.broadcast %cst_61 : f32 to vector<8x128xf32>
    %123 = arith.addf %121, %122 : vector<8x128xf32>
    %124 = arith.mulf %123, %110 : vector<8x128xf32>
    %cst_62 = arith.constant 0.000000e+00 : f32
    %125 = vector.broadcast %cst_62 : f32 to vector<8x128xf32>
    %126 = arith.subf %125, %104 : vector<8x128xf32>
    %127 = arith.mulf %126, %104 : vector<8x128xf32>
    %128 = math.exp %127 : vector<8x128xf32>
    %129 = arith.mulf %124, %128 : vector<8x128xf32>
    %cst_63 = arith.constant 1.000000e+00 : f32
    %130 = vector.broadcast %cst_63 : f32 to vector<8x128xf32>
    %131 = arith.subf %130, %129 : vector<8x128xf32>
    %cst_64 = arith.constant 0.000000e+00 : f32
    %132 = vector.broadcast %cst_64 : f32 to vector<8x128xf32>
    %133 = arith.cmpf oge, %103, %132 : vector<8x128xf32>
    %cst_65 = arith.constant 0.000000e+00 : f32
    %134 = vector.broadcast %cst_65 : f32 to vector<8x128xf32>
    %135 = arith.subf %134, %131 : vector<8x128xf32>
    %136 = arith.select %133, %131, %135 : vector<8x128xi1>, vector<8x128xf32>
    %cst_66 = arith.constant 1.000000e+00 : f32
    %137 = vector.broadcast %cst_66 : f32 to vector<8x128xf32>
    %138 = arith.addf %137, %136 : vector<8x128xf32>
    %139 = arith.mulf %101, %138 : vector<8x128xf32>
    %140 = arith.mulf %139, %99 : vector<8x128xf32>
    %cst_67 = arith.constant dense<0.000000e+00> : vector<4x128xf32>
    %141 = tpu.matmul %53, %140, %cst_67 {dimension_numbers = #tpu.dot_dimension_numbers<[1], [0], [0], [1], [0, 0, 1, 1], [], []>} : vector<4x8xf32>, vector<8x128xf32>, vector<4x128xf32> -> vector<4x128xf32>
    %c0_68 = arith.constant 0 : index
    %c0_69 = arith.constant 0 : index
    %c0_70 = arith.constant 0 : index
    %142 = vector.load %arg8[%c0_68, %c0_69, %c0_70] : memref<1x4x128xf32, #tpu.memory_space<vmem>>, vector<1x4x128xf32>
    %143 = vector.shape_cast %142 : vector<1x4x128xf32> to vector<4x128xf32>
    %144 = vector.shape_cast %141 : vector<4x128xf32> to vector<1x4x128xf32>
    tpu.vector_store %arg8[%c0_68, %c0_69, %c0_70], %144 {strides = array<i32>} : memref<1x4x128xf32, #tpu.memory_space<vmem>>, vector<1x4x128xf32>,
    return
  }
  func.func @transform_0(%arg0: i32, %arg1: i32) -> (i32, i32, i32) {
    %c0_i32 = arith.constant 0 : i32
    %c0_i32_0 = arith.constant 0 : i32
    return %arg0, %c0_i32, %arg1 : i32, i32, i32
  }
  func.func @transform_1(%arg0: i32, %arg1: i32) -> (i32, i32, i32, i32) {
    %c0_i32 = arith.constant 0 : i32
    %c0_i32_0 = arith.constant 0 : i32
    %c0_i32_1 = arith.constant 0 : i32
    return %arg0, %arg1, %c0_i32, %c0_i32_0 : i32, i32, i32, i32
  }
  func.func @transform_2(%arg0: i32, %arg1: i32) -> (i32, i32, i32, i32) {
    %c0_i32 = arith.constant 0 : i32
    %c0_i32_0 = arith.constant 0 : i32
    %c0_i32_1 = arith.constant 0 : i32
    return %arg0, %arg1, %c0_i32, %c0_i32_0 : i32, i32, i32, i32
  }
  func.func @transform_3(%arg0: i32, %arg1: i32) -> (i32, i32) {
    %c0_i32 = arith.constant 0 : i32
    %c0_i32_0 = arith.constant 0 : i32
    %c0_i32_1 = arith.constant 0 : i32
    return %c0_i32, %c0_i32_0 : i32, i32
  }
  func.func @transform_4(%arg0: i32, %arg1: i32) -> (i32, i32) {
    %c0_i32 = arith.constant 0 : i32
    %c0_i32_0 = arith.constant 0 : i32
    %c0_i32_1 = arith.constant 0 : i32
    return %c0_i32, %c0_i32_0 : i32, i32
  }
  func.func @transform_5(%arg0: i32, %arg1: i32) -> (i32, i32) {
    %c0_i32 = arith.constant 0 : i32
    %c0_i32_0 = arith.constant 0 : i32
    %c0_i32_1 = arith.constant 0 : i32
    return %c0_i32, %c0_i32_0 : i32, i32
  }
  func.func @transform_6(%arg0: i32, %arg1: i32) -> (i32, i32, i32) {
    %c0_i32 = arith.constant 0 : i32
    %c0_i32_0 = arith.constant 0 : i32
    return %arg0, %c0_i32, %arg1 : i32, i32, i32
  }
}

</mosaic_0001>

<llo_original>
// kernel: gdfn_forward.1
$region0: #{gdfn_forward.1}
  #allocation0 [shape = 'u32[]', space=smem, size = 0x4, offset = 0x4, fixed_abs, tag = 'smem constant byte address 0x4 - core index']
  #allocation1 [shape = 'u32[72,128]{1,0:T(1,128)}', space=vmem, size = 0x9000, scoped, tag = 'internal scratch']
  #allocation2 [shape = 'f32[16,160]{1,0:T(8,128)}', space=vmem, size = 0x4000, scoped, tag = 'scratch operand']
  #allocation3 [shape = 'f32[16,160]{1,0:T(8,128)}', space=vmem, size = 0x4000, scoped, tag = 'scratch operand']
  #allocation4 [shape = 'f32[16,160]{1,0:T(8,128)}', space=vmem, size = 0x4000, scoped, tag = 'scratch operand']
  %s0 = inlined_call_operand.vmem [shape: f32[2,4,256], index: 0, kind: input, shape index: {}]
  %s1 = inlined_call_operand.vmem [shape: f32[2,2,4,16], index: 1, kind: input, shape index: {}]
  %s2 = inlined_call_operand.vmem [shape: f32[2,2,4,16], index: 2, kind: input, shape index: {}]
  %s3 = inlined_call_operand.vmem [shape: f32[16,4], index: 3, kind: input, shape index: {}]
  %s4 = inlined_call_operand.vmem [shape: f32[16,9], index: 4, kind: input, shape index: {}]
  %s5 = inlined_call_operand.vmem [shape: f32[4,8], index: 5, kind: input, shape index: {}]
  %s6 = inlined_call_operand.vmem [shape: f32[2,4,256], index: 6, kind: output, shape index: {}]
  %s7 = sld [smem:[#allocation0]]
  $region57: #{gdfn_forward.1} parent=0
    _
  %s9 = ssub.s32 1, %s7
  %s10 = scalar_select 0, %s9, %s7
  loop: start=0, step=1, limit=6
  $region2: #{gdfn_forward.1} parent=0 // loop_pre_header
    _
  $region3: #{gdfn_forward.1} parent=0 // loop_header
    %s12 = sphi 0, %s16
    %p13 = scmp.ge.s32.totalorder %s12, 6
    %s19 = sphi 0, %s31
    %s20 = sphi 0, %s27
    %s21 = sphi 0, %s19
    %s22 = sphi 0, %s20
    %s23 = sphi 0, %s21
    %s24 = sphi 0, %s22
    %s36 = sphi 0, %s38
    %s39 = sphi 0, %s36
    %s40 = sphi 0, %s39
    %s56 = sphi 0, %s40
    %s64 = sphi 0, %s66
    %s67 = sphi 0, %s64
    %s68 = sphi 0, %s67
    %s84 = sphi 0, %s68
    %s92 = sphi 0, %s94
    %s95 = sphi 0, %s92
    %s96 = sphi 0, %s95
    %s112 = sphi 0, %s96
    %s116 = sphi 0, %s116
    %s118 = sphi 0, %s116
    %s119 = sphi 0, %s118
    %s133 = sphi 0, %s119
    %s137 = sphi 0, %s137
    %s139 = sphi 0, %s137
    %s140 = sphi 0, %s139
    %s154 = sphi 0, %s140
    %s158 = sphi 0, %s158
    %s160 = sphi 0, %s158
    %s161 = sphi 0, %s160
    %s175 = sphi 0, %s161
    %s183 = sphi 0, %s185
    %s186 = sphi 0, %s183
    %s187 = sphi 0, %s186
    %s203 = sphi 0, %s187
  $region4: #{gdfn_forward.1} parent=0 // loop_header_branch
    %15 = sbr.rel (%p13) target = $region8
  $region5: #{gdfn_forward.1} parent=0 // loop_body
    %s17 = ssub.s32 %s12, 1
    %s18 = ssub.s32 %s12, 2
    %s25 = sadd.s32 1, %s20
    %p26 = scmp.ge.s32.totalorder %s25, 2
    %s27 = scalar_select %p26, 0, %s25
    %s28 = sadd.s32 1, %s19
    %s29 = scalar_select %p26, %s28, %s19
    %p30 = scmp.ge.s32.totalorder %s29, 2
    %s31 = scalar_select %p30, 0, %s29
    %s32 = ssub.s32 %s19, %s31
    %s33 = ssub.s32 %s20, %s27
    %s34 = sor.u32 %s32, %s33
    %p35 = scmp.eq.s32.totalorder %s34, 0
    %s37 = sadd.s32 %s36, 1
    %s38 = scalar_select %p35, %s36, %s37
    %p41 = pneg %p35
    %p42 = scmp.eq.s32.totalorder %s12, 3
    %p43 = por %p41, %p42
    %p44 = scmp.ne.s32.totalorder %s36, %s39
    %p45 = scmp.eq.s32.totalorder %s12, 0
    %p46 = por %p44, %p45
    %p47 = scmp.ne.s32.totalorder %s36, %s39
    %p48 = scmp.eq.s32.totalorder %s17, 3
    %p49 = por %p47, %p48
    %p50 = scmp.ne.s32.totalorder %s39, %s40
    %p51 = scmp.eq.s32.totalorder %s17, 0
    %p52 = por %p50, %p51
    %p53 = scmp.ne.s32.totalorder %s39, %s40
    %p54 = scmp.eq.s32.totalorder %s18, 3
    %p55 = por %p53, %p54
    %p57 = scmp.ne.s32.totalorder %s40, %s56
    %p58 = scmp.eq.s32.totalorder %s18, 0
    %p59 = por %p57, %p58
    %s60 = ssub.s32 %s19, %s31
    %s61 = ssub.s32 %s20, %s27
    %s62 = sor.u32 %s60, %s61
    %p63 = scmp.eq.s32.totalorder %s62, 0
    %s65 = sadd.s32 %s64, 1
    %s66 = scalar_select %p63, %s64, %s65
    %p69 = pneg %p63
    %p70 = scmp.eq.s32.totalorder %s12, 3
    %p71 = por %p69, %p70
    %p72 = scmp.ne.s32.totalorder %s64, %s67
    %p73 = scmp.eq.s32.totalorder %s12, 0
    %p74 = por %p72, %p73
    %p75 = scmp.ne.s32.totalorder %s64, %s67
    %p76 = scmp.eq.s32.totalorder %s17, 3
    %p77 = por %p75, %p76
    %p78 = scmp.ne.s32.totalorder %s67, %s68
    %p79 = scmp.eq.s32.totalorder %s17, 0
    %p80 = por %p78, %p79
    %p81 = scmp.ne.s32.totalorder %s67, %s68
    %p82 = scmp.eq.s32.totalorder %s18, 3
    %p83 = por %p81, %p82
    %p85 = scmp.ne.s32.totalorder %s68, %s84
    %p86 = scmp.eq.s32.totalorder %s18, 0
    %p87 = por %p85, %p86
    %s88 = ssub.s32 %s19, %s31
    %s89 = ssub.s32 %s20, %s27
    %s90 = sor.u32 %s88, %s89
    %p91 = scmp.eq.s32.totalorder %s90, 0
    %s93 = sadd.s32 %s92, 1
    %s94 = scalar_select %p91, %s92, %s93
    %p97 = pneg %p91
    %p98 = scmp.eq.s32.totalorder %s12, 3
    %p99 = por %p97, %p98
    %p100 = scmp.ne.s32.totalorder %s92, %s95
    %p101 = scmp.eq.s32.totalorder %s12, 0
    %p102 = por %p100, %p101
    %p103 = scmp.ne.s32.totalorder %s92, %s95
    %p104 = scmp.eq.s32.totalorder %s17, 3
    %p105 = por %p103, %p104
    %p106 = scmp.ne.s32.totalorder %s95, %s96
    %p107 = scmp.eq.s32.totalorder %s17, 0
    %p108 = por %p106, %p107
    %p109 = scmp.ne.s32.totalorder %s95, %s96
    %p110 = scmp.eq.s32.totalorder %s18, 3
    %p111 = por %p109, %p110
    %p113 = scmp.ne.s32.totalorder %s96, %s112
    %p114 = scmp.eq.s32.totalorder %s18, 0
    %p115 = por %p113, %p114
    %s117 = sadd.s32 %s116, 1
    %p120 = scmp.eq.s32.totalorder %s12, 3
    %p121 = scmp.ne.s32.totalorder %s116, %s118
    %p122 = scmp.eq.s32.totalorder %s12, 0
    %p123 = por %p121, %p122
    %p124 = scmp.ne.s32.totalorder %s116, %s118
    %p125 = scmp.eq.s32.totalorder %s17, 3
    %p126 = por %p124, %p125
    %p127 = scmp.ne.s32.totalorder %s118, %s119
    %p128 = scmp.eq.s32.totalorder %s17, 0
    %p129 = por %p127, %p128
    %p130 = scmp.ne.s32.totalorder %s118, %s119
    %p131 = scmp.eq.s32.totalorder %s18, 3
    %p132 = por %p130, %p131
    %p134 = scmp.ne.s32.totalorder %s119, %s133
    %p135 = scmp.eq.s32.totalorder %s18, 0
    %p136 = por %p134, %p135
    %s138 = sadd.s32 %s137, 1
    %p141 = scmp.eq.s32.totalorder %s12, 3
    %p142 = scmp.ne.s32.totalorder %s137, %s139
    %p143 = scmp.eq.s32.totalorder %s12, 0
    %p144 = por %p142, %p143
    %p145 = scmp.ne.s32.totalorder %s137, %s139
    %p146 = scmp.eq.s32.totalorder %s17, 3
    %p147 = por %p145, %p146
    %p148 = scmp.ne.s32.totalorder %s139, %s140
    %p149 = scmp.eq.s32.totalorder %s17, 0
    %p150 = por %p148, %p149
    %p151 = scmp.ne.s32.totalorder %s139, %s140
    %p152 = scmp.eq.s32.totalorder %s18, 3
    %p153 = por %p151, %p152
    %p155 = scmp.ne.s32.totalorder %s140, %s154
    %p156 = scmp.eq.s32.totalorder %s18, 0
    %p157 = por %p155, %p156
    %s159 = sadd.s32 %s158, 1
    %p162 = scmp.eq.s32.totalorder %s12, 3
    %p163 = scmp.ne.s32.totalorder %s158, %s160
    %p164 = scmp.eq.s32.totalorder %s12, 0
    %p165 = por %p163, %p164
    %p166 = scmp.ne.s32.totalorder %s158, %s160
    %p167 = scmp.eq.s32.totalorder %s17, 3
    %p168 = por %p166, %p167
    %p169 = scmp.ne.s32.totalorder %s160, %s161
    %p170 = scmp.eq.s32.totalorder %s17, 0
    %p171 = por %p169, %p170
    %p172 = scmp.ne.s32.totalorder %s160, %s161
    %p173 = scmp.eq.s32.totalorder %s18, 3
    %p174 = por %p172, %p173
    %p176 = scmp.ne.s32.totalorder %s161, %s175
    %p177 = scmp.eq.s32.totalorder %s18, 0
    %p178 = por %p176, %p177
    %s179 = ssub.s32 %s19, %s31
    %s180 = ssub.s32 %s20, %s27
    %s181 = sor.u32 %s179, %s180
    %p182 = scmp.eq.s32.totalorder %s181, 0
    %s184 = sadd.s32 %s183, 1
    %s185 = scalar_select %p182, %s183, %s184
    %p188 = pneg %p182
    %p189 = scmp.eq.s32.totalorder %s12, 3
    %p190 = por %p188, %p189
    %p191 = scmp.ne.s32.totalorder %s183, %s186
    %p192 = scmp.eq.s32.totalorder %s12, 0
    %p193 = por %p191, %p192
    %p194 = scmp.ne.s32.totalorder %s183, %s186
    %p195 = scmp.eq.s32.totalorder %s17, 3
    %p196 = por %p194, %p195
    %p197 = scmp.ne.s32.totalorder %s186, %s187
    %p198 = scmp.eq.s32.totalorder %s17, 0
    %p199 = por %p197, %p198
    %p200 = scmp.ne.s32.totalorder %s186, %s187
    %p201 = scmp.eq.s32.totalorder %s18, 3
    %p202 = por %p200, %p201
    %p204 = scmp.ne.s32.totalorder %s187, %s203
    %p205 = scmp.eq.s32.totalorder %s18, 0
    %p206 = por %p204, %p205
    %p207 = scmp.le.s32.totalorder 1, %s12
    %p208 = scmp.lt.s32.totalorder %s12, 5
    %p209 = pnand %p207, %p208
    %p210 = pneg %p209
    // Predicated region
    $region9: #{gdfn_forward.1} parent=5 // pred_check
      _
    $region10: #{gdfn_forward.1} parent=5 // pred_check_branch
      %212 = sbr.rel (%p209) target = $region12
    $region11: #{gdfn_forward.1} parent=5 // pred_region
      %s213 = ssub.s32 %s12, 1
      // Predicated region
      $region13: #{gdfn_forward.1} parent=11 // pred_check
        %p214 = pneg %p129
      $region14: #{gdfn_forward.1} parent=11 // pred_check_branch
        %216 = sbr.rel (%p214) target = $region16
      $region15: #{gdfn_forward.1} parent=11 // pred_region
        _
      $region16: #{gdfn_forward.1} parent=11 // pred_fallthru
        _
      // Predicated region
      $region17: #{gdfn_forward.1} parent=11 // pred_check
        %p217 = pneg %p150
      $region18: #{gdfn_forward.1} parent=11 // pred_check_branch
        %219 = sbr.rel (%p217) target = $region20
      $region19: #{gdfn_forward.1} parent=11 // pred_region
        _
      $region20: #{gdfn_forward.1} parent=11 // pred_fallthru
        _
      // Predicated region
      $region21: #{gdfn_forward.1} parent=11 // pred_check
        %p220 = pneg %p171
      $region22: #{gdfn_forward.1} parent=11 // pred_check_branch
        %222 = sbr.rel (%p220) target = $region24
      $region23: #{gdfn_forward.1} parent=11 // pred_region
        _
      $region24: #{gdfn_forward.1} parent=11 // pred_fallthru
        _
    $region12: #{gdfn_forward.1} parent=5 // pred_fallthru
      _
    %p223 = scmp.lt.s32.totalorder %s12, 4
    // Predicated region
    $region25: #{gdfn_forward.1} parent=5 // pred_check
      %p224 = pneg %p223
    $region26: #{gdfn_forward.1} parent=5 // pred_check_branch
      %226 = sbr.rel (%p224) target = $region28
    $region27: #{gdfn_forward.1} parent=5 // pred_region
      // Predicated region
      $region29: #{gdfn_forward.1} parent=27 // pred_check
        %p227 = pneg %p46
      $region30: #{gdfn_forward.1} parent=27 // pred_check_branch
        %229 = sbr.rel (%p227) target = $region32
      $region31: #{gdfn_forward.1} parent=27 // pred_region
        %p230 = scmp.lt.s32.totalorder %s19, 1
        %s231 = scalar_select %p230, %s19, 1
        %p232 = scmp.lt.s32.totalorder %s20, 1
        %s233 = scalar_select %p232, %s20, 1
        %s234 = smul.addr %s231, 2
        %s235 = sadd.s32 %s233, %s234
        %s236 = smul.addr %s235, 4
        %s237 = scalar_lea.vmem %s0, %s236
      $region32: #{gdfn_forward.1} parent=27 // pred_fallthru
        _
      // Predicated region
      $region33: #{gdfn_forward.1} parent=27 // pred_check
        %p238 = pneg %p74
      $region34: #{gdfn_forward.1} parent=27 // pred_check_branch
        %240 = sbr.rel (%p238) target = $region36
      $region35: #{gdfn_forward.1} parent=27 // pred_region
        %p241 = scmp.lt.s32.totalorder %s19, 1
        %s242 = scalar_select %p241, %s19, 1
        %p243 = scmp.lt.s32.totalorder %s20, 1
        %s244 = scalar_select %p243, %s20, 1
        %s245 = smul.addr %s242, 2
        %s246 = sadd.s32 %s244, %s245
        %s247 = smul.addr %s246, 4
        %s248 = scalar_lea.vmem %s1, %s247
      $region36: #{gdfn_forward.1} parent=27 // pred_fallthru
        _
      // Predicated region
      $region37: #{gdfn_forward.1} parent=27 // pred_check
        %p249 = pneg %p102
      $region38: #{gdfn_forward.1} parent=27 // pred_check_branch
        %251 = sbr.rel (%p249) target = $region40
      $region39: #{gdfn_forward.1} parent=27 // pred_region
        %p252 = scmp.lt.s32.totalorder %s19, 1
        %s253 = scalar_select %p252, %s19, 1
        %p254 = scmp.lt.s32.totalorder %s20, 1
        %s255 = scalar_select %p254, %s20, 1
        %s256 = smul.addr %s253, 2
        %s257 = sadd.s32 %s255, %s256
        %s258 = smul.addr %s257, 4
        %s259 = scalar_lea.vmem %s2, %s258
      $region40: #{gdfn_forward.1} parent=27 // pred_fallthru
        _
    $region28: #{gdfn_forward.1} parent=5 // pred_fallthru
      _
    %p260 = scmp.le.s32.totalorder 1, %s12
    %p261 = scmp.lt.s32.totalorder %s12, 5
    %p262 = pnand %p260, %p261
    %p263 = pneg %p262
    // Predicated region
    $region41: #{gdfn_forward.1} parent=5 // pred_check
      _
    $region42: #{gdfn_forward.1} parent=5 // pred_check_branch
      %265 = sbr.rel (%p262) target = $region44
    $region43: #{gdfn_forward.1} parent=5 // pred_region
      %s266 = ssub.s32 %s12, 1
      %p267 = scmp.lt.s32.totalorder %s21, 1
      %s268 = scalar_select %p267, %s21, 1
      %p269 = scmp.lt.s32.totalorder %s22, 1
      %s270 = scalar_select %p269, %s22, 1
      %s271 = smul.addr %s268, 2
      %s272 = sadd.s32 %s270, %s271
      %s273 = smul.addr %s272, 4
      %s274 = scalar_lea.vmem %s0, %s273
      %p275 = pneg %p52
      %p276 = pneg %p49
      %p277 = scmp.lt.s32.totalorder %s21, 1
      %s278 = scalar_select %p277, %s21, 1
      %p279 = scmp.lt.s32.totalorder %s22, 1
      %s280 = scalar_select %p279, %s22, 1
      %s281 = smul.addr %s278, 2
      %s282 = sadd.s32 %s280, %s281
      %s283 = smul.addr %s282, 4
      %s284 = scalar_lea.vmem %s1, %s283
      %p285 = pneg %p80
      %p286 = pneg %p77
      %p287 = scmp.lt.s32.totalorder %s21, 1
      %s288 = scalar_select %p287, %s21, 1
      %p289 = scmp.lt.s32.totalorder %s22, 1
      %s290 = scalar_select %p289, %s22, 1
      %s291 = smul.addr %s288, 2
      %s292 = sadd.s32 %s290, %s291
      %s293 = smul.addr %s292, 4
      %s294 = scalar_lea.vmem %s2, %s293
      %p295 = pneg %p108
      %p296 = pneg %p105
      %p297 = pneg %p129
      %p298 = pneg %p126
      %p299 = pneg %p150
      %p300 = pneg %p147
      %p301 = pneg %p171
      %p302 = pneg %p168
      %p303 = pneg %p199
      %p304 = pneg %p196
      %p305 = scmp.lt.s32.totalorder %s21, 1
      %s306 = scalar_select %p305, %s21, 1
      %p307 = scmp.lt.s32.totalorder %s22, 1
      %s308 = scalar_select %p307, %s22, 1
      %s309 = smul.addr %s306, 2
      %s310 = sadd.s32 %s308, %s309
      %s311 = smul.addr %s310, 4
      %s312 = scalar_lea.vmem %s6, %s311
      %p313 = scmp.lt.s32.totalorder %s21, 1
      %s314 = scalar_select %p313, %s21, 1
      %p315 = scmp.lt.s32.totalorder %s22, 1
      %s316 = scalar_select %p315, %s22, 1
      %s317 = smul.addr %s314, 2
      %s318 = sadd.s32 %s316, %s317
      %s319 = smul.addr %s318, 4
      %s320 = scalar_lea.vmem %s0, %s319
      %p321 = scmp.lt.s32.totalorder %s21, 1
      %s322 = scalar_select %p321, %s21, 1
      %p323 = scmp.lt.s32.totalorder %s22, 1
      %s324 = scalar_select %p323, %s22, 1
      %s325 = smul.addr %s322, 2
      %s326 = sadd.s32 %s324, %s325
      %s327 = smul.addr %s326, 4
      %s328 = scalar_lea.vmem %s1, %s327
      %p329 = scmp.lt.s32.totalorder %s21, 1
      %s330 = scalar_select %p329, %s21, 1
      %p331 = scmp.lt.s32.totalorder %s22, 1
      %s332 = scalar_select %p331, %s22, 1
      %s333 = smul.addr %s330, 2
      %s334 = sadd.s32 %s332, %s333
      %s335 = smul.addr %s334, 4
      %s336 = scalar_lea.vmem %s2, %s335
      %p337 = scmp.lt.s32.totalorder %s21, 1
      %s338 = scalar_select %p337, %s21, 1
      %p339 = scmp.lt.s32.totalorder %s22, 1
      %s340 = scalar_select %p339, %s22, 1
      %s341 = smul.addr %s338, 2
      %s342 = sadd.s32 %s340, %s341
      %s343 = smul.addr %s342, 4
      %s344 = scalar_lea.vmem %s6, %s343
      %v345 = vld [vmem:[%s3] sm:$0xff]
      %v346 = vld [vmem:[%s3 + $0x8] sm:$0xff]
      %v347 = vld [vmem:[%s328] sm:$0xf]
      %vm348 = vcmask 31744
      %v350 = vsel %vm348, %v345, 0
      %v353 = vsel %vm348, %v346, 0
      %vm355 = vcmask 1043456
      %v357 = vsel %vm355, %v347, 0
      %359 = vmatpush.msra.mxu0 0.0
      %360 = vmatpush.msra.mxu0 0.0
      %361 = vmatpush.msra.mxu0 0.0
      %362 = vmatpush.msra.mxu0 0.0
      %363 = vmatpush.msra.mxu0 0.0
      %364 = vmatpush.msra.mxu0 0.0
      %365 = vmatpush.msra.mxu0 0.0
      %366 = vmatpush.msra.mxu0 0.0
      %367 = vmatpush.msra.mxu0 0.0
      %368 = vmatpush.msra.mxu0 0.0
      %369 = vmatpush.msra.mxu0 0.0
      %370 = vmatpush.msra.mxu0 0.0
      %371 = vmatpush.msra.mxu0 0.0
      %372 = vmatpush.msra.mxu0 0.0
      %373 = vmatpush.msra.mxu0 0.0
      %374 = vmatpush.msra.mxu0 %v357
      %375 = vmatmul.f32.gmra.mxu0 %v350
      %v376 = vpop.f32.mrf.mxu0
      %v377 = vadd.f32 0.0, %v376
      %378 = vmatmul.f32.gmra.mxu0 %v353
      %v379 = vpop.f32.mrf.mxu0
      %v380 = vadd.f32 0.0, %v379
      %381 = vdwg.mxu0
      %vm382 = vcmask 130048
      %383 = vst.msk [vmem:[#allocation2] sm:$0xff] %vm382, %v377
      %384 = vst.msk [vmem:[#allocation2 + $0x10] sm:$0xff] %vm382, %v380
      %v385 = vld [vmem:[%s320] sm:$0xf]
      %v387 = vsel %vm355, %v385, 0
      %389 = vmatpush.msra.mxu0 0.0
      %390 = vmatpush.msra.mxu0 0.0
      %391 = vmatpush.msra.mxu0 0.0
      %392 = vmatpush.msra.mxu0 0.0
      %393 = vmatpush.msra.mxu0 0.0
      %394 = vmatpush.msra.mxu0 0.0
      %395 = vmatpush.msra.mxu0 0.0
      %396 = vmatpush.msra.mxu0 0.0
      %397 = vmatpush.msra.mxu0 0.0
      %398 = vmatpush.msra.mxu0 0.0
      %399 = vmatpush.msra.mxu0 0.0
      %400 = vmatpush.msra.mxu0 0.0
      %401 = vmatpush.msra.mxu0 0.0
      %402 = vmatpush.msra.mxu0 0.0
      %403 = vmatpush.msra.mxu0 0.0
      %404 = vmatpush.msra.mxu0 %v387
      %405 = vmatmul.f32.gmra.mxu0 %v350
      %v406 = vpop.f32.mrf.mxu0
      %v407 = vadd.f32 0.0, %v406
      %408 = vmatmul.f32.gmra.mxu0 %v353
      %v409 = vpop.f32.mrf.mxu0
      %v410 = vadd.f32 0.0, %v409
      %411 = vdwg.mxu0
      %414 = vrot.lane.b32.xlu0 %v407, 16
      %v415 = vpop.permute.xlu0 %414
      %416 = vrot.lane.b32.xlu0 %v410, 16
      %v417 = vpop.permute.xlu0 %416
      %vm420 = vcmask 1047680
      %421 = vst.msk [vmem:[#allocation2] sm:$0xff] %vm420, %v415
      %422 = vst.msk [vmem:[#allocation2 + $0x8] sm:$0xff] %vm382, %v415
      %423 = vst.msk [vmem:[#allocation2 + $0x10] sm:$0xff] %vm420, %v417
      %424 = vst.msk [vmem:[#allocation2 + $0x18] sm:$0xff] %vm382, %v417
      %v425 = vld [vmem:[%s336] sm:$0xf]
      %v427 = vsel %vm355, %v425, 0
      %429 = vmatpush.msra.mxu0 0.0
      %430 = vmatpush.msra.mxu0 0.0
      %431 = vmatpush.msra.mxu0 0.0
      %432 = vmatpush.msra.mxu0 0.0
      %433 = vmatpush.msra.mxu0 0.0
      %434 = vmatpush.msra.mxu0 0.0
      %435 = vmatpush.msra.mxu0 0.0
      %436 = vmatpush.msra.mxu0 0.0
      %437 = vmatpush.msra.mxu0 0.0
      %438 = vmatpush.msra.mxu0 0.0
      %439 = vmatpush.msra.mxu0 0.0
      %440 = vmatpush.msra.mxu0 0.0
      %441 = vmatpush.msra.mxu0 0.0
      %442 = vmatpush.msra.mxu0 0.0
      %443 = vmatpush.msra.mxu0 0.0
      %444 = vmatpush.msra.mxu0 %v427
      %445 = vmatmul.f32.gmra.mxu0 %v350
      %v446 = vpop.f32.mrf.mxu0
      %v447 = vadd.f32 0.0, %v446
      %448 = vmatmul.f32.gmra.mxu0 %v353
      %v449 = vpop.f32.mrf.mxu0
      %v450 = vadd.f32 0.0, %v449
      %451 = vdwg.mxu0
      %454 = vrot.lane.b32.xlu0 %v447, 16
      %v455 = vpop.permute.xlu0 %454
      %456 = vrot.lane.b32.xlu0 %v450, 16
      %v457 = vpop.permute.xlu0 %456
      %vm460 = vcmask 261248
      %461 = vst.msk [vmem:[#allocation2 + $0x8] sm:$0xff] %vm460, %v455
      %462 = vst.msk [vmem:[#allocation2 + $0x18] sm:$0xff] %vm460, %v457
      %v463 = vld [vmem:[#allocation2] sm:$0xff]
      %v464 = vld [vmem:[#allocation2 + $0x8] sm:$0xff]
      %v465 = vld [vmem:[#allocation2 + $0x10] sm:$0xff]
      %v466 = vld [vmem:[#allocation2 + $0x18] sm:$0xff]
      %v467 = vlaneseq
      %v468 = vand.u32 %v467, 127
      %v469 = vadd.s32 %v468, 128
      %vm470 = vcmp.lt.s32.totalorder %v468, 0
      %v471 = vsub.s32 0, %v468
      %v472 = vsel %vm470, %v471, %v468
      %v473 = vshrl.u32 %v472, 4
      %v474 = vand.u32 %v472, 15
      %v475 = vsub.s32 0, %v474
      %v476 = vsel %vm470, %v475, %v474
      %vm477 = vcmp.lt.s32.totalorder %v469, 0
      %v478 = vsub.s32 0, %v469
      %v479 = vsel %vm477, %v478, %v469
      %v480 = vshrl.u32 %v479, 4
      %v481 = vand.u32 %v479, 15
      %v482 = vsub.s32 0, %v481
      %v483 = vsel %vm477, %v482, %v481
      %vm484 = vcmp.ne.s32.totalorder %v476, 0
      %vm485 = vcmp.ne.s32.totalorder %v483, 0
      %vm486 = vcmp.lt.s32.totalorder %v476, 0
      %vm487 = vcmp.lt.s32.totalorder %v483, 0
      %vm488 = vmand %vm486, %vm484
      %vm489 = vmand %vm487, %vm485
      %v490 = vadd.s32 %v476, 16
      %v491 = vadd.s32 %v483, 16
      %v492 = vsel %vm488, %v490, %v476
      %v493 = vsel %vm489, %v491, %v483
      %vm494 = vcmp.eq.s32.totalorder %v492, 0
      %vm495 = vcmp.eq.s32.totalorder %v493, 0
      %v496 = vsel %vm494, 1, 0
      %v497 = vsel %vm495, 1, 0
      %vm498 = vcmp.eq.s32.totalorder %v496, 1
      %vm499 = vcmp.eq.s32.totalorder %v497, 1
      %v500 = vsel %vm498, 0.0, %v463
      %v501 = vsel %vm499, 0.0, %v464
      %v502 = vsel %vm498, 0.0, %v465
      %v503 = vsel %vm499, 0.0, %v466
      %508 = vrot.lane.b32.xlu0 %v500, 127
      %v509 = vpop.permute.xlu0 %508
      %510 = vrot.lane.b32.xlu0 %v501, 127
      %v511 = vpop.permute.xlu0 %510
      %512 = vrot.lane.b32.xlu0 %v502, 127
      %v513 = vpop.permute.xlu0 %512
      %514 = vrot.lane.b32.xlu0 %v503, 127
      %v515 = vpop.permute.xlu0 %514
      %vm516 = vcmask 1039360
      %v517 = vsel %vm516, %v509, %v511
      %v518 = vsel %vm516, %v513, %v515
      %vm523 = vcmask 252928
      %v524 = vsel %vm523, %v511, 0.0
      %v525 = vsel %vm523, %v515, 0.0
      %526 = vst [vmem:[#allocation4] sm:$0xff] %v517
      %vm527 = vcmask 261120
      %528 = vst.msk [vmem:[#allocation4 + $0x8] sm:$0xff] %vm527, %v524
      %529 = vst [vmem:[#allocation4 + $0x10] sm:$0xff] %v518
      %530 = vst.msk [vmem:[#allocation4 + $0x18] sm:$0xff] %vm527, %v525
      %vm531 = vcmp.eq.s32.totalorder %v492, 15
      %vm532 = vcmp.eq.s32.totalorder %v493, 15
      %v533 = vsel %vm531, 1, 0
      %v534 = vsel %vm532, 1, 0
      %vm535 = vcmp.eq.s32.totalorder %v533, 1
      %vm536 = vcmp.eq.s32.totalorder %v534, 1
      %v537 = vsel %vm535, 0.0, %v463
      %v538 = vsel %vm536, 0.0, %v464
      %v539 = vsel %vm535, 0.0, %v465
      %v540 = vsel %vm536, 0.0, %v466
      %545 = vrot.lane.b32.xlu0 %v537, 1
      %v546 = vpop.permute.xlu0 %545
      %547 = vrot.lane.b32.xlu0 %v538, 1
      %v548 = vpop.permute.xlu0 %547
      %549 = vrot.lane.b32.xlu0 %v539, 1
      %v550 = vpop.permute.xlu0 %549
      %551 = vrot.lane.b32.xlu0 %v540, 1
      %v552 = vpop.permute.xlu0 %551
      %vm553 = vcmask 7168
      %v554 = vsel %vm553, %v546, %v548
      %v555 = vsel %vm553, %v550, %v552
      %v560 = vsel %vm553, 0.0, %v546
      %v561 = vsel %vm553, 0.0, %v550
      %562 = vst [vmem:[#allocation3] sm:$0xff] %v560
      %563 = vst.msk [vmem:[#allocation3 + $0x8] sm:$0xff] %vm527, %v554
      %564 = vst [vmem:[#allocation3 + $0x10] sm:$0xff] %v561
      %565 = vst.msk [vmem:[#allocation3 + $0x18] sm:$0xff] %vm527, %v555
      %v566 = vld [vmem:[%s4] sm:$0xff]
      %v567 = vld [vmem:[%s4 + $0x8] sm:$0xff]
      %v568 = vld [vmem:[%s5] sm:$0xf]
      %v569 = vld [vmem:[#allocation3] sm:$0xff]
      %v570 = vld [vmem:[#allocation3 + $0x10] sm:$0xff]
      %572 = vset.pattern.permute.xlu0 0
      %573 = vperm.xlu0 %572, %v566
      %v574 = vpop.permute.xlu0 %573
      %577 = vset.pattern.permute.xlu0 0
      %578 = vperm.xlu0 %577, %v567
      %v579 = vpop.permute.xlu0 %578
      %v581 = vmul.f32 %v574, %v569
      %v582 = vmul.f32 %v579, %v570
      %v583 = vld [vmem:[#allocation2] sm:$0xff]
      %v584 = vld [vmem:[#allocation2 + $0x10] sm:$0xff]
      %585 = vset.pattern.permute.xlu0 1
      %586 = vperm.xlu0 %585, %v566
      %v587 = vpop.permute.xlu0 %586
      %589 = vset.pattern.permute.xlu0 1
      %590 = vperm.xlu0 %589, %v567
      %v591 = vpop.permute.xlu0 %590
      %v593 = vmul.f32 %v587, %v583
      %v594 = vmul.f32 %v591, %v584
      %v595 = vadd.f32 %v581, %v593
      %v596 = vadd.f32 %v582, %v594
      %v597 = vld [vmem:[#allocation4] sm:$0xff]
      %v598 = vld [vmem:[#allocation4 + $0x10] sm:$0xff]
      %599 = vset.pattern.permute.xlu0 2
      %600 = vperm.xlu0 %599, %v566
      %v601 = vpop.permute.xlu0 %600
      %603 = vset.pattern.permute.xlu0 2
      %604 = vperm.xlu0 %603, %v567
      %v605 = vpop.permute.xlu0 %604
      %v607 = vmul.f32 %v601, %v597
      %v608 = vmul.f32 %v605, %v598
      %v609 = vadd.f32 %v595, %v607
      %v610 = vadd.f32 %v596, %v608
      %v611 = vld [vmem:[#allocation3] sm:$0xff]
      %v612 = vld [vmem:[#allocation3 + $0x8] sm:$0xff]
      %v613 = vld [vmem:[#allocation3 + $0x10] sm:$0xff]
      %v614 = vld [vmem:[#allocation3 + $0x18] sm:$0xff]
      %615 = vset.pattern.permute.xlu0 3
      %616 = vperm.xlu0 %615, %v566
      %v617 = vpop.permute.xlu0 %616
      %619 = vset.pattern.permute.xlu0 3
      %620 = vperm.xlu0 %619, %v567
      %v621 = vpop.permute.xlu0 %620
      %v623 = vmul.f32 %v617, %v611
      %v624 = vmul.f32 %v617, %v612
      %v625 = vmul.f32 %v621, %v613
      %v626 = vmul.f32 %v621, %v614
      %631 = vrot.lane.b32.xlu0 %v623, 112
      %v632 = vpop.permute.xlu0 %631
      %633 = vrot.lane.b32.xlu0 %v624, 112
      %v634 = vpop.permute.xlu0 %633
      %635 = vrot.lane.b32.xlu0 %v625, 112
      %v636 = vpop.permute.xlu0 %635
      %637 = vrot.lane.b32.xlu0 %v626, 112
      %v638 = vpop.permute.xlu0 %637
      %vm639 = vcmask 916480
      %v640 = vsel %vm639, %v632, %v634
      %v641 = vsel %vm639, %v636, %v638
      %v644 = vadd.f32 %v609, %v640
      %v645 = vadd.f32 %v610, %v641
      %v646 = vld [vmem:[#allocation2] sm:$0xff]
      %v647 = vld [vmem:[#allocation2 + $0x8] sm:$0xff]
      %v648 = vld [vmem:[#allocation2 + $0x10] sm:$0xff]
      %v649 = vld [vmem:[#allocation2 + $0x18] sm:$0xff]
      %650 = vset.pattern.permute.xlu0 4
      %651 = vperm.xlu0 %650, %v566
      %v652 = vpop.permute.xlu0 %651
      %654 = vset.pattern.permute.xlu0 4
      %655 = vperm.xlu0 %654, %v567
      %v656 = vpop.permute.xlu0 %655
      %v658 = vmul.f32 %v652, %v646
      %v659 = vmul.f32 %v652, %v647
      %v660 = vmul.f32 %v656, %v648
      %v661 = vmul.f32 %v656, %v649
      %666 = vrot.lane.b32.xlu0 %v658, 112
      %v667 = vpop.permute.xlu0 %666
      %668 = vrot.lane.b32.xlu0 %v659, 112
      %v669 = vpop.permute.xlu0 %668
      %670 = vrot.lane.b32.xlu0 %v660, 112
      %v671 = vpop.permute.xlu0 %670
      %672 = vrot.lane.b32.xlu0 %v661, 112
      %v673 = vpop.permute.xlu0 %672
      %v674 = vsel %vm639, %v667, %v669
      %v675 = vsel %vm639, %v671, %v673
      %v678 = vadd.f32 %v644, %v674
      %v679 = vadd.f32 %v645, %v675
      %v680 = vld [vmem:[#allocation4] sm:$0xff]
      %v681 = vld [vmem:[#allocation4 + $0x8] sm:$0xff]
      %v682 = vld [vmem:[#allocation4 + $0x10] sm:$0xff]
      %v683 = vld [vmem:[#allocation4 + $0x18] sm:$0xff]
      %684 = vset.pattern.permute.xlu0 5
      %685 = vperm.xlu0 %684, %v566
      %v686 = vpop.permute.xlu0 %685
      %688 = vset.pattern.permute.xlu0 5
      %689 = vperm.xlu0 %688, %v567
      %v690 = vpop.permute.xlu0 %689
      %v692 = vmul.f32 %v686, %v680
      %v693 = vmul.f32 %v686, %v681
      %v694 = vmul.f32 %v690, %v682
      %v695 = vmul.f32 %v690, %v683
      %700 = vrot.lane.b32.xlu0 %v692, 112
      %v701 = vpop.permute.xlu0 %700
      %702 = vrot.lane.b32.xlu0 %v693, 112
      %v703 = vpop.permute.xlu0 %702
      %704 = vrot.lane.b32.xlu0 %v694, 112
      %v705 = vpop.permute.xlu0 %704
      %706 = vrot.lane.b32.xlu0 %v695, 112
      %v707 = vpop.permute.xlu0 %706
      %v708 = vsel %vm639, %v701, %v703
      %v709 = vsel %vm639, %v705, %v707
      %v712 = vadd.f32 %v678, %v708
      %v713 = vadd.f32 %v679, %v709
      %714 = vset.pattern.permute.xlu0 6
      %715 = vperm.xlu0 %714, %v566
      %v716 = vpop.permute.xlu0 %715
      %718 = vset.pattern.permute.xlu0 6
      %719 = vperm.xlu0 %718, %v567
      %v720 = vpop.permute.xlu0 %719
      %v722 = vmul.f32 %v716, %v611
      %v723 = vmul.f32 %v716, %v612
      %v724 = vmul.f32 %v720, %v613
      %v725 = vmul.f32 %v720, %v614
      %730 = vrot.lane.b32.xlu0 %v722, 96
      %v731 = vpop.permute.xlu0 %730
      %732 = vrot.lane.b32.xlu0 %v723, 96
      %v733 = vpop.permute.xlu0 %732
      %734 = vrot.lane.b32.xlu0 %v724, 96
      %v735 = vpop.permute.xlu0 %734
      %736 = vrot.lane.b32.xlu0 %v725, 96
      %v737 = vpop.permute.xlu0 %736
      %vm738 = vcmask 785408
      %v739 = vsel %vm738, %v731, %v733
      %v740 = vsel %vm738, %v735, %v737
      %v743 = vadd.f32 %v712, %v739
      %v744 = vadd.f32 %v713, %v740
      %745 = vset.pattern.permute.xlu0 7
      %746 = vperm.xlu0 %745, %v566
      %v747 = vpop.permute.xlu0 %746
      %749 = vset.pattern.permute.xlu0 7
      %750 = vperm.xlu0 %749, %v567
      %v751 = vpop.permute.xlu0 %750
      %v753 = vmul.f32 %v747, %v646
      %v754 = vmul.f32 %v747, %v647
      %v755 = vmul.f32 %v751, %v648
      %v756 = vmul.f32 %v751, %v649
      %761 = vrot.lane.b32.xlu0 %v753, 96
      %v762 = vpop.permute.xlu0 %761
      %763 = vrot.lane.b32.xlu0 %v754, 96
      %v764 = vpop.permute.xlu0 %763
      %765 = vrot.lane.b32.xlu0 %v755, 96
      %v766 = vpop.permute.xlu0 %765
      %767 = vrot.lane.b32.xlu0 %v756, 96
      %v768 = vpop.permute.xlu0 %767
      %v769 = vsel %vm738, %v762, %v764
      %v770 = vsel %vm738, %v766, %v768
      %v773 = vadd.f32 %v743, %v769
      %v774 = vadd.f32 %v744, %v770
      %775 = vset.pattern.permute.xlu0 8
      %776 = vperm.xlu0 %775, %v566
      %v777 = vpop.permute.xlu0 %776
      %779 = vset.pattern.permute.xlu0 8
      %780 = vperm.xlu0 %779, %v567
      %v781 = vpop.permute.xlu0 %780
      %v783 = vmul.f32 %v777, %v680
      %v784 = vmul.f32 %v777, %v681
      %v785 = vmul.f32 %v781, %v682
      %v786 = vmul.f32 %v781, %v683
      %791 = vrot.lane.b32.xlu0 %v783, 96
      %v792 = vpop.permute.xlu0 %791
      %793 = vrot.lane.b32.xlu0 %v784, 96
      %v794 = vpop.permute.xlu0 %793
      %795 = vrot.lane.b32.xlu0 %v785, 96
      %v796 = vpop.permute.xlu0 %795
      %797 = vrot.lane.b32.xlu0 %v786, 96
      %v798 = vpop.permute.xlu0 %797
      %v799 = vsel %vm738, %v792, %v794
      %v800 = vsel %vm738, %v796, %v798
      %v803 = vadd.f32 %v773, %v799
      %v804 = vadd.f32 %v774, %v800
      %v805 = vmul.f32 %v803, 0.5
      %v806 = vmul.f32 %v803, 0.70710677
      %v807 = vand.u32 2147483647, %v806
      %v808 = vmul.f32 %v807, 0.3275911
      %v809 = vadd.f32 %v808, 1.0
      %v810 = vrcp.pop %v809
      %v811 = vmul.f32 %v809, %v810
      %v812 = vsub.f32 1.0, %v811
      %v813 = vmul.f32 %v810, %v812
      %v814 = vadd.f32 %v810, %v813
      %vm815 = vweird.f32 %v809
      %vm816 = vweird.f32 %v810
      %vm817 = vmor %vm815, %vm816
      %v818 = vsel %vm817, %v810, %v814
      %v819 = vand.u32 2147483647, %v809
      %vm820 = vcmp.eq.f32.partialorder %v819, 8.507059e+37
      %v821 = vand.u32 %v809, 2147483648
      %v822 = vor.u32 1.1754944e-38, %v821
      %v823 = vsel %vm820, %v822, %v818
      %v824 = vmul.f32 1.0, %v823
      %v825 = vmul.f32 %v824, 1.0614054
      %v826 = vadd.f32 %v825, -1.4531521
      %v827 = vmul.f32 %v826, %v824
      %v828 = vadd.f32 %v827, 1.4214138
      %v829 = vmul.f32 %v828, %v824
      %v830 = vadd.f32 %v829, -0.28449672
      %v831 = vmul.f32 %v830, %v824
      %v832 = vadd.f32 %v831, 0.2548296
      %v833 = vmul.f32 %v832, %v824
      %v834 = vsub.f32 0.0, %v807
      %v835 = vmul.f32 %v834, %v807
      %v836 = vmul.f32 %v835, 1.442695
      %v837 = vpow.pop %v836
      %v838 = vmul.f32 %v833, %v837
      %v839 = vsub.f32 1.0, %v838
      %vm840 = vcmp.ge.f32.partialorder %v806, 0.0
      %v841 = vsub.f32 0.0, %v839
      %v842 = vsel %vm840, %v839, %v841
      %v843 = vadd.f32 %v842, 1.0
      %v844 = vmul.f32 %v805, %v843
      %v845 = vmul.f32 %v844, %v804
      %vm846 = vcmask 64512
      %v848 = vsel %vm846, %v568, 0
      %850 = vmatpush.msra.mxu0 0.0
      %851 = vmatpush.msra.mxu0 0.0
      %852 = vmatpush.msra.mxu0 0.0
      %853 = vmatpush.msra.mxu0 0.0
      %854 = vmatpush.msra.mxu0 0.0
      %855 = vmatpush.msra.mxu0 0.0
      %856 = vmatpush.msra.mxu0 0.0
      %857 = vmatpush.msra.mxu0 0.0
      %858 = vmatpush.msra.mxu0 0.0
      %859 = vmatpush.msra.mxu0 0.0
      %860 = vmatpush.msra.mxu0 0.0
      %861 = vmatpush.msra.mxu0 0.0
      %862 = vmatpush.msra.mxu0 0.0
      %863 = vmatpush.msra.mxu0 0.0
      %864 = vmatpush.msra.mxu0 0.0
      %865 = vmatpush.msra.mxu0 %v845
      %866 = vmatmul.f32.gmra.mxu0 %v848
      %v867 = vpop.f32.mrf.mxu0
      %v868 = vadd.f32 0.0, %v867
      %869 = vdwg.mxu0
      %870 = vst [vmem:[%s344] sm:$0xf] %v868
      %p871 = scmp.lt.s32.totalorder %s21, 1
      %s872 = scalar_select %p871, %s21, 1
      %p873 = scmp.lt.s32.totalorder %s22, 1
      %s874 = scalar_select %p873, %s22, 1
      %s875 = smul.addr %s872, 2
      %s876 = sadd.s32 %s874, %s875
      %s877 = smul.addr %s876, 4
      %s878 = scalar_lea.vmem %s6, %s877
      // Predicated region
      $region45: #{gdfn_forward.1} parent=43 // pred_check
        %p879 = pneg %p196
      $region46: #{gdfn_forward.1} parent=43 // pred_check_branch
        %881 = sbr.rel (%p879) target = $region48
      $region47: #{gdfn_forward.1} parent=43 // pred_region
        _
      $region48: #{gdfn_forward.1} parent=43 // pred_fallthru
        _
    $region44: #{gdfn_forward.1} parent=5 // pred_fallthru
      _
    %p882 = scmp.le.s32.totalorder 2, %s12
    // Predicated region
    $region49: #{gdfn_forward.1} parent=5 // pred_check
      %p883 = pneg %p882
    $region50: #{gdfn_forward.1} parent=5 // pred_check_branch
      %885 = sbr.rel (%p883) target = $region52
    $region51: #{gdfn_forward.1} parent=5 // pred_region
      %s886 = ssub.s32 %s12, 2
      // Predicated region
      $region53: #{gdfn_forward.1} parent=51 // pred_check
        %p887 = pneg %p202
      $region54: #{gdfn_forward.1} parent=51 // pred_check_branch
        %889 = sbr.rel (%p887) target = $region56
      $region55: #{gdfn_forward.1} parent=51 // pred_region
        %p890 = scmp.lt.s32.totalorder %s23, 1
        %s891 = scalar_select %p890, %s23, 1
        %p892 = scmp.lt.s32.totalorder %s24, 1
        %s893 = scalar_select %p892, %s24, 1
        %s894 = smul.addr %s891, 2
        %s895 = sadd.s32 %s893, %s894
        %s896 = smul.addr %s895, 4
        %s897 = scalar_lea.vmem %s6, %s896
      $region56: #{gdfn_forward.1} parent=51 // pred_fallthru
        _
    $region52: #{gdfn_forward.1} parent=5 // pred_fallthru
      _
  $region6: #{gdfn_forward.1} parent=0 // loop_footer
    %s16 = sadd.s32 1, %s12
  $region7: #{gdfn_forward.1} parent=0 // loop_footer_branch
    %11 = sbr.rel target = $region3
  $region8: #{gdfn_forward.1} parent=0 // loop_exit
    _

</llo_original>
